<compile_context>
chip_gen: v6e
topology: v6e:2x2x1
jax: 0.10.0
libtpu: 0.0.40
codegen_flags: <defaults>
</compile_context>

<pallas_src>
import functools

import jax
import jax.numpy as jnp
from jax.experimental import pallas as pl
from jax.experimental.pallas import tpu as pltpu

IN_FEATURES = 9
HIDDEN = 9
OUT_FEATURES = 1

_K_PAD = 16          # features/hidden padded to a sublane-aligned 16
_P_ROWS = 16         # parameter-slab sublanes
_P_COLS = 128        # parameter-slab lanes (one full vreg lane width)
_B1_COL = 16         # slab column holding b1
_W2_COL = 17         # slab column holding fc2 weight (as a column)
_B2_COL = 18         # slab[0, 18] holds b2

_SMALL_BATCH_THRESHOLD = 1024   # below this, plain XLA ops win (launch cost)
_MAX_BATCH_TILE = 32768         # keeps double-buffered VMEM < ~7 MiB


def pack_params(w1, b1, w2, b2):
    """Pack fc1/fc2 parameters into ONE (16, 128) f32 slab (done once).

    Layout (all other entries zero):
      slab[0:9, 0:9]  = W1   (out, in) -- native PyTorch layout; zero-padded
                               to a (16, 16) MXU-friendly LHS when sliced.
      slab[0:9, 16]   = b1
      slab[0:9, 17]   = W2[0, :]  (fc2 weight stored as a column)
      slab[0,   18]   = b2
    """
    slab = jnp.zeros((_P_ROWS, _P_COLS), jnp.float32)
    slab = slab.at[0:HIDDEN, 0:IN_FEATURES].set(
        jnp.asarray(w1, jnp.float32).reshape(HIDDEN, IN_FEATURES))
    slab = slab.at[0:HIDDEN, _B1_COL].set(
        jnp.asarray(b1, jnp.float32).reshape(HIDDEN))
    slab = slab.at[0:HIDDEN, _W2_COL].set(
        jnp.asarray(w2, jnp.float32).reshape(HIDDEN))
    slab = slab.at[0, _B2_COL].set(jnp.asarray(b2, jnp.float32).reshape(()))
    return slab


def _mlp_kernel(p_ref, xt_ref, ot_ref):
    """One batch tile: x^T (16, tb) -> y^T (1, tb); batch on the lane axis."""
    p = p_ref[...]                                   # (16, 128) resident slab
    xt = xt_ref[...]                                 # (16, tb) features x batch

    w1 = p[:, 0:_K_PAD]                              # (16, 16), zero-padded
    b1 = p[:, _B1_COL:_B1_COL + 1]                   # (16, 1)
    w2 = p[:, _W2_COL:_W2_COL + 1]                   # (16, 1)
    b2 = p[0:1, _B2_COL:_B2_COL + 1]                 # (1, 1)

    # fc1 on the MXU: (16,16) @ (16,tb) -> (16,tb), f32 accumulation.  All
    # dims are tile-aligned (padded rows/cols are zero), so padded hidden
    # rows come out as relu(0 + 0) = 0 and drop out of fc2 below.
    h = jnp.dot(w1, xt, preferred_element_type=jnp.float32)
    h = jnp.maximum(h + b1, 0.0)                     # bias + ReLU on the VPU

    # fc2: elementwise scale (VPU) + sublane reduction (XLU) + sigmoid (EUP);
    # none of this touches the MXU slot.
    z = jnp.sum(w2 * h, axis=0, keepdims=True) + b2  # (1, tb)
    ot_ref[...] = jax.nn.sigmoid(z).astype(ot_ref.dtype)


def _fallback_forward(x, packed_params):
    """Plain fused-XLA path for small batches (kernel launch cost dominates)."""
    p = packed_params
    w1 = p[0:HIDDEN, 0:IN_FEATURES]
    b1 = p[0:HIDDEN, _B1_COL]
    w2 = p[0:HIDDEN, _W2_COL]
    b2 = p[0, _B2_COL]
    h = jnp.maximum(x.astype(jnp.float32) @ w1.T + b1, 0.0)
    return jax.nn.sigmoid(h @ w2[:, None] + b2)


def neural_net_forward(x, packed_params, *, batch_tile=8192, use_pallas=None):
    """Forward pass of NeuralNet.

    x: (B, 9); packed_params: output of pack_params().
    Returns (B, 1) float32, identical semantics to the PyTorch module.
    `batch_tile` is a sweepable knob (multiple of 128); `use_pallas=None`
    auto-dispatches (plain XLA below _SMALL_BATCH_THRESHOLD).
    """
    B = x.shape[0]
    if use_pallas is None:
        use_pallas = B >= _SMALL_BATCH_THRESHOLD
    if not use_pallas:
        return _fallback_forward(x, packed_params)

    assert batch_tile % 128 == 0, "batch_tile must be a multiple of 128"
    # Shrink the tile to the (128-rounded) batch so small/medium batches do
    # not pad to a full 8K tile; cap it so VMEM stays comfortable on v5e/v7x.
    tb = int(min(min(batch_tile, _MAX_BATCH_TILE), pl.cdiv(B, 128) * 128))
    tb = max(tb, 128)
    b_pad = pl.cdiv(B, tb) * tb

    # Single fused transpose+pad pass: features -> 16 sublanes (aligned for
    # the MXU), batch -> lanes, zero padding.  If activations are already
    # feature-major upstream, this pass can be skipped entirely.
    xt = jnp.pad(x.T.astype(jnp.float32),
                 ((0, _K_PAD - IN_FEATURES), (0, b_pad - B)))

    yt = pl.pallas_call(
        _mlp_kernel,
        out_shape=jax.ShapeDtypeStruct((1, b_pad), jnp.float32),
        grid=(b_pad // tb,),
        in_specs=[
            # Parameter slab: constant index_map -> stays resident in VMEM.
            pl.BlockSpec((_P_ROWS, _P_COLS), lambda i: (0, 0)),
            # x^T batch tile, lane-dense.
            pl.BlockSpec((_K_PAD, tb), lambda i: (0, i)),
        ],
        # Lane-dense output tile (full 128-lane multiples -> unmasked stores).
        out_specs=pl.BlockSpec((1, tb), lambda i: (0, i)),
        compiler_params=pltpu.CompilerParams(
            # Independent batch tiles: lets v7x split the grid across its two
            # TensorCores (no-op on v5e/v6e).
            dimension_semantics=("parallel",),
            # Explicit scoped-VMEM budget so tile sweeps don't hit v5e's
            # 16 MiB default; well under physical VMEM on every generation.
            vmem_limit_bytes=32 * 1024 * 1024,
        ),
    )(packed_params, xt)

    # Drop batch padding and restore the PyTorch (B, 1) output shape.
    return yt[0, :B].reshape(B, 1)


def _reference(x, w1, b1, w2, b2):
    h = jnp.maximum(x @ w1.T + b1, 0.0)
    return jax.nn.sigmoid(h @ w2.T + b2)


if __name__ == "__main__":
    key = jax.random.PRNGKey(0)
    kx, k1, k2, k3, k4, kx2 = jax.random.split(key, 6)

    # Deterministic parameter init (mimics PyTorch Linear's uniform bound).
    bound1 = 1.0 / jnp.sqrt(jnp.float32(IN_FEATURES))
    bound2 = 1.0 / jnp.sqrt(jnp.float32(HIDDEN))
    w1 = jax.random.uniform(k1, (HIDDEN, IN_FEATURES), jnp.float32, -bound1, bound1)
    b1 = jax.random.uniform(k2, (HIDDEN,), jnp.float32, -bound1, bound1)
    w2 = jax.random.uniform(k3, (OUT_FEATURES, HIDDEN), jnp.float32, -bound2, bound2)
    b2 = jax.random.uniform(k4, (OUT_FEATURES,), jnp.float32, -bound2, bound2)

    # Parameter packing happens once, outside the forward path.
    params = pack_params(w1, b1, w2, b2)

    # (1) Small batch, Pallas kernel forced (exercises the kernel itself).
    B = 8
    x = jax.random.normal(kx, (B, IN_FEATURES), jnp.float32)
    ref = _reference(x, w1, b1, w2, b2)
    fwd_kernel = jax.jit(functools.partial(neural_net_forward, use_pallas=True))
    out = jax.block_until_ready(fwd_kernel(x, params))
    assert out.shape == (B, 1), out.shape
    assert jnp.allclose(out, ref, atol=1e-4, rtol=1e-4), "pallas path mismatch"

    # (2) Small batch, auto dispatch (fused-XLA fallback path).
    out_auto = jax.block_until_ready(jax.jit(neural_net_forward)(x, params))
    assert out_auto.shape == (B, 1)
    assert jnp.allclose(out_auto, ref, atol=1e-4, rtol=1e-4), "fallback mismatch"

    # (3) Non-tile-aligned batch with a multi-step grid (padding + pipelining).
    B2 = 2000
    x2 = jax.random.normal(kx2, (B2, IN_FEATURES), jnp.float32)
    ref2 = _reference(x2, w1, b1, w2, b2)
    fwd_grid = jax.jit(functools.partial(neural_net_forward,
                                         use_pallas=True, batch_tile=512))
    out2 = jax.block_until_ready(fwd_grid(x2, params))
    assert out2.shape == (B2, 1), out2.shape
    assert jnp.allclose(out2, ref2, atol=1e-4, rtol=1e-4), "gridded path mismatch"

    print("KERNEL_OK")
</pallas_src>

<mosaic_0001>
module attributes {stable_mosaic.version = 11 : i64} {
  func.func @_mlp_kernel(%arg0: i32, %arg1: memref<16x128xf32, #tpu.memory_space<vmem>>, %arg2: memref<16x128xf32, #tpu.memory_space<vmem>>, %arg3: memref<1x128xf32, #tpu.memory_space<vmem>>) attributes {dimension_semantics = [#tpu.dimension_semantics<parallel>], iteration_bounds = array<i64: 1>, scalar_prefetch = 0 : i64, scratch_operands = 0 : i64, tpu.core_type = #tpu.core_type<tc>, window_params = [{pipeline_mode = #tpu.pipeline_mode<synchronous>, transform_indices = @transform_0, window_bounds = array<i64: 16, 128>}, {transform_indices = @transform_1, window_bounds = array<i64: 16, 128>}, {transform_indices = @transform_2, window_bounds = array<i64: 1, 128>}]} {
    %c0 = arith.constant 0 : index
    %c0_0 = arith.constant 0 : index
    %0 = vector.load %arg1[%c0, %c0_0] : memref<16x128xf32, #tpu.memory_space<vmem>>, vector<16x128xf32>
    %c0_1 = arith.constant 0 : index
    %c0_2 = arith.constant 0 : index
    %1 = vector.load %arg2[%c0_1, %c0_2] : memref<16x128xf32, #tpu.memory_space<vmem>>, vector<16x128xf32>
    %2 = vector.extract_strided_slice %0 {offsets = [0, 0], sizes = [16, 16], strides = [1, 1]} : vector<16x128xf32> to vector<16x16xf32>
    %3 = vector.extract_strided_slice %0 {offsets = [0, 16], sizes = [16, 1], strides = [1, 1]} : vector<16x128xf32> to vector<16x1xf32>
    %4 = vector.extract_strided_slice %0 {offsets = [0, 17], sizes = [16, 1], strides = [1, 1]} : vector<16x128xf32> to vector<16x1xf32>
    %5 = vector.extract_strided_slice %0 {offsets = [0, 18], sizes = [1, 1], strides = [1, 1]} : vector<16x128xf32> to vector<1x1xf32>
    %cst = arith.constant dense<0.000000e+00> : vector<16x128xf32>
    %6 = tpu.matmul %2, %1, %cst {dimension_numbers = #tpu.dot_dimension_numbers<[1], [0], [0], [1], [0, 0, 1, 1], [], []>} : vector<16x16xf32>, vector<16x128xf32>, vector<16x128xf32> -> vector<16x128xf32>
    %7 = vector.broadcast %3 : vector<16x1xf32> to vector<16x128xf32>
    %8 = arith.addf %6, %7 : vector<16x128xf32>
    %cst_3 = arith.constant 0.000000e+00 : f32
    %9 = vector.broadcast %cst_3 : f32 to vector<16x128xf32>
    %10 = arith.maximumf %8, %9 : vector<16x128xf32>
    %11 = vector.broadcast %4 : vector<16x1xf32> to vector<16x128xf32>
    %12 = arith.mulf %11, %10 : vector<16x128xf32>
    %cst_4 = arith.constant dense<0.000000e+00> : vector<128xf32>
    %13 = vector.multi_reduction <add>, %12, %cst_4 [0] : vector<16x128xf32> to vector<128xf32>
    %14 = vector.shape_cast %13 : vector<128xf32> to vector<1x128xf32>
    %15 = vector.broadcast %5 : vector<1x1xf32> to vector<1x128xf32>
    %16 = arith.addf %14, %15 : vector<1x128xf32>
    %17 = arith.negf %16 : vector<1x128xf32>
    %18 = math.exp %17 : vector<1x128xf32>
    %cst_5 = arith.constant 1.000000e+00 : f32
    %19 = vector.broadcast %cst_5 : f32 to vector<1x128xf32>
    %20 = arith.addf %19, %18 : vector<1x128xf32>
    %21 = arith.divf %19, %20 : vector<1x128xf32>
    %c0_6 = arith.constant 0 : index
    %c0_7 = arith.constant 0 : index
    %22 = vector.load %arg3[%c0_6, %c0_7] : memref<1x128xf32, #tpu.memory_space<vmem>>, vector<1x128xf32>
    tpu.vector_store %arg3[%c0_6, %c0_7], %21 {strides = array<i32>} : memref<1x128xf32, #tpu.memory_space<vmem>>, vector<1x128xf32>,
    return
  }
  func.func @transform_0(%arg0: i32) -> (i32, i32) {
    %c0_i32 = arith.constant 0 : i32
    %c0_i32_0 = arith.constant 0 : i32
    %c0_i32_1 = arith.constant 0 : i32
    return %c0_i32, %c0_i32_0 : i32, i32
  }
  func.func @transform_1(%arg0: i32) -> (i32, i32) {
    %c0_i32 = arith.constant 0 : i32
    %c0_i32_0 = arith.constant 0 : i32
    return %c0_i32, %arg0 : i32, i32
  }
  func.func @transform_2(%arg0: i32) -> (i32, i32) {
    %c0_i32 = arith.constant 0 : i32
    %c0_i32_0 = arith.constant 0 : i32
    return %c0_i32, %arg0 : i32, i32
  }
}

</mosaic_0001>

<llo_original>
// kernel: neural_net_forward.1
$region0: #{neural_net_forward.1}
  #allocation0 [shape = 'u32[]', space=smem, size = 0x4, offset = 0x4, fixed_abs, tag = 'smem constant byte address 0x4 - core index']
  #allocation1 [shape = 'u32[144,128]{1,0:T(1,128)}', space=vmem, size = 0x12000, scoped, tag = 'internal scratch']
  %s0 = inlined_call_operand.vmem [shape: f32[16,128], index: 0, kind: input, shape index: {}]
  %s1 = inlined_call_operand.vmem [shape: f32[16,128], index: 1, kind: input, shape index: {}]
  %s2 = inlined_call_operand.vmem [shape: f32[1,128], index: 2, kind: output, shape index: {}]
  %s3 = sld [smem:[#allocation0]]
  $region18: #{neural_net_forward.1} parent=0
    _
  %s5 = ssub.s32 1, %s3
  %s6 = scalar_select 0, %s5, %s3
  // Predicated region
  $region2: #{neural_net_forward.1} parent=0 // pred_check
    _
  $region3: #{neural_net_forward.1} parent=0 // pred_check_branch
    %8 = sbr.rel (0) target = $region5
  $region4: #{neural_net_forward.1} parent=0 // pred_region
    _
  $region5: #{neural_net_forward.1} parent=0 // pred_fallthru
    _
  // Predicated region
  $region6: #{neural_net_forward.1} parent=0 // pred_check
    _
  $region7: #{neural_net_forward.1} parent=0 // pred_check_branch
    %10 = sbr.rel (0) target = $region9
  $region8: #{neural_net_forward.1} parent=0 // pred_region
    _
  $region9: #{neural_net_forward.1} parent=0 // pred_fallthru
    _
  %v11 = vld [vmem:[%s0] sm:$0xff]
  %v12 = vld [vmem:[%s0 + $0x8] sm:$0xff]
  %v13 = vld [vmem:[%s1] sm:$0xff]
  %v14 = vld [vmem:[%s1 + $0x8] sm:$0xff]
  %16 = vset.pattern.permute.xlu0 16
  %17 = vperm.xlu0 %16, %v11
  %v18 = vpop.permute.xlu0 %17
  %21 = vset.pattern.permute.xlu0 16
  %22 = vperm.xlu0 %21, %v12
  %v23 = vpop.permute.xlu0 %22
  %vm25 = vcmask 130048
  %v26 = vsel %vm25, %v11, 0
  %v28 = vsel %vm25, %v12, 0
  %30 = vmatprep.subr.mxu0 0.0
  %31 = vmatpush1.msra.mxu0 0.0
  %32 = vmatprep.subr.mxu0 0.0
  %33 = vmatpush1.msra.mxu0 0.0
  %34 = vmatprep.subr.mxu0 0.0
  %35 = vmatpush1.msra.mxu0 0.0
  %36 = vmatprep.subr.mxu0 0.0
  %37 = vmatpush1.msra.mxu0 0.0
  %38 = vmatprep.subr.mxu0 0.0
  %39 = vmatpush1.msra.mxu0 0.0
  %40 = vmatprep.subr.mxu0 0.0
  %41 = vmatpush1.msra.mxu0 0.0
  %42 = vmatprep.subr.mxu0 0.0
  %43 = vmatpush1.msra.mxu0 0.0
  %44 = vmatprep.subr.mxu0 0.0
  %45 = vmatpush1.msra.mxu0 0.0
  %46 = vmatprep.subr.mxu0 0.0
  %47 = vmatpush1.msra.mxu0 0.0
  %48 = vmatprep.subr.mxu0 0.0
  %49 = vmatpush1.msra.mxu0 0.0
  %50 = vmatprep.subr.mxu0 0.0
  %51 = vmatpush1.msra.mxu0 0.0
  %52 = vmatprep.subr.mxu0 0.0
  %53 = vmatpush1.msra.mxu0 0.0
  %54 = vmatprep.subr.mxu0 0.0
  %55 = vmatpush1.msra.mxu0 0.0
  %56 = vmatprep.subr.mxu0 0.0
  %57 = vmatpush1.msra.mxu0 0.0
  %58 = vmatprep.subr.mxu0 0.0
  %59 = vmatpush1.msra.mxu0 %v14
  %60 = vmatprep.subr.mxu0 0.0
  %61 = vmatpush1.msra.mxu0 %v13
  %62 = vmatprep.subr.mxu0 0.0
  %63 = vmatpush2.msra.mxu0 0.0
  %64 = vmatprep.subr.mxu0 0.0
  %65 = vmatpush2.msra.mxu0 0.0
  %66 = vmatprep.subr.mxu0 0.0
  %67 = vmatpush2.msra.mxu0 0.0
  %68 = vmatprep.subr.mxu0 0.0
  %69 = vmatpush2.msra.mxu0 0.0
  %70 = vmatprep.subr.mxu0 0.0
  %71 = vmatpush2.msra.mxu0 0.0
  %72 = vmatprep.subr.mxu0 0.0
  %73 = vmatpush2.msra.mxu0 0.0
  %74 = vmatprep.subr.mxu0 0.0
  %75 = vmatpush2.msra.mxu0 0.0
  %76 = vmatprep.subr.mxu0 0.0
  %77 = vmatpush2.msra.mxu0 0.0
  %78 = vmatprep.subr.mxu0 0.0
  %79 = vmatpush2.msra.mxu0 0.0
  %80 = vmatprep.subr.mxu0 0.0
  %81 = vmatpush2.msra.mxu0 0.0
  %82 = vmatprep.subr.mxu0 0.0
  %83 = vmatpush2.msra.mxu0 0.0
  %84 = vmatprep.subr.mxu0 0.0
  %85 = vmatpush2.msra.mxu0 0.0
  %86 = vmatprep.subr.mxu0 0.0
  %87 = vmatpush2.msra.mxu0 0.0
  %88 = vmatprep.subr.mxu0 0.0
  %89 = vmatpush2.msra.mxu0 0.0
  %90 = vmatprep.subr.mxu0 0.0
  %91 = vmatpush2.msra.mxu0 0.0
  %92 = vmatprep.subr.mxu0 0.0
  %93 = vmatpush2.msra.mxu0 0.0
  %94 = vmatprep.mubr.f32.mxu0 0.0
  %95 = vmatmul.mubr.f32.gmra.mxu0 %v26
  %v96 = vpop.f32.mrf.mxu0
  %v97 = vadd.f32 %v18, %v96
  %v98 = vpop.f32.mrf.mxu0
  %99 = vmatprep.mubr.f32.mxu0 0.0
  %100 = vmatmul.mubr.f32.gmra.mxu0 %v28
  %v101 = vpop.f32.mrf.mxu0
  %v102 = vadd.f32 %v23, %v101
  %v103 = vpop.f32.mrf.mxu0
  %104 = vdwg.mxu0
  %v105 = vmax.f32 %v97, 0.0
  %v106 = vmax.f32 %v102, 0.0
  %107 = vset.pattern.permute.xlu0 17
  %108 = vperm.xlu0 %107, %v11
  %v109 = vpop.permute.xlu0 %108
  %111 = vset.pattern.permute.xlu0 17
  %112 = vperm.xlu0 %111, %v12
  %v113 = vpop.permute.xlu0 %112
  %v115 = vmul.f32 %v109, %v105
  %v116 = vmul.f32 %v113, %v106
  %v117 = vadd.f32 %v115, %v116
  %v118 = vrot.slane %v117, 4
  %v119 = vadd.f32 %v117, %v118
  %v120 = vrot.slane %v119, 2
  %v121 = vadd.f32 %v119, %v120
  %v122 = vrot.slane %v121, 1
  %v123 = vadd.f32 %v121, %v122
  %124 = vset.pattern.permute.xlu0 18
  %125 = vperm.xlu0 %124, %v11
  %v126 = vpop.permute.xlu0 %125
  %v128 = vadd.f32 %v123, %v126
  %v129 = vxor.u32 %v128, 2147483648
  %v130 = vmul.f32 %v129, 1.442695
  %v131 = vpow.pop %v130
  %v132 = vadd.f32 %v131, 1.0
  %v133 = vrcp.pop %v132
  %v134 = vmul.f32 1.0, %v133
  %135 = vst [vmem:[%s2] sm:$0x1] %v134
  // Predicated region
  $region10: #{neural_net_forward.1} parent=0 // pred_check
    _
  $region11: #{neural_net_forward.1} parent=0 // pred_check_branch
    %137 = sbr.rel (0) target = $region13
  $region12: #{neural_net_forward.1} parent=0 // pred_region
    _
  $region13: #{neural_net_forward.1} parent=0 // pred_fallthru
    _
  // Predicated region
  $region14: #{neural_net_forward.1} parent=0 // pred_check
    _
  $region15: #{neural_net_forward.1} parent=0 // pred_check_branch
    %139 = sbr.rel (0) target = $region17
  $region16: #{neural_net_forward.1} parent=0 // pred_region
    _
  $region17: #{neural_net_forward.1} parent=0 // pred_fallthru
    _

</llo_original>
